<compile_context>
chip_gen: v7x
topology: tpu7x:2x2x1
jax: 0.10.0
libtpu: 0.0.40
codegen_flags: <defaults>
</compile_context>

<pallas_src>
import functools

import jax
import jax.numpy as jnp
import numpy as np
from jax.experimental import pallas as pl
from jax.experimental.pallas import tpu as pltpu


def _inverse_model_kernel(s_ref, sp_ref, w1_ref, b1_ref, w2_ref, b2_ref, o_ref):
    S = s_ref.shape[1]
    w_dtype = w1_ref.dtype  # matmul input dtype (bf16 by default)

    # No-op casts when the caller already supplies bf16 inputs.
    s = s_ref[...].astype(w_dtype)
    sp = sp_ref[...].astype(w_dtype)

    # Hidden layer: split-concat matmul on the MXU, f32 accumulation.
    # Static slices of the single (2S, H) weight ref are zero-cost views.
    h = jnp.dot(s, w1_ref[:S, :], preferred_element_type=jnp.float32)
    h = h + jnp.dot(sp, w1_ref[S:, :], preferred_element_type=jnp.float32)
    # Bias + ReLU in f32 on the VPU (v5e VPU has no bf16 path).
    h = jnp.maximum(h + b1_ref[...], 0.0)

    # Output layer.
    out = jnp.dot(h.astype(w_dtype), w2_ref[...],
                  preferred_element_type=jnp.float32)
    o_ref[...] = (out + b2_ref[...]).astype(o_ref.dtype)


def prepare_inverse_model_params(w1, b1, w2, b2, *, matmul_dtype=jnp.bfloat16):
    """One-time layout prep (call at parameter init, NOT per forward call).

    w1: (H, 2S) PyTorch Linear layout; w2: (A, H); b1: (H,); b2: (A,).
    Returns (w1_t (2S,H), b1 (1,H) f32, w2_t (H,A), b2 (1,A) f32).
    """
    w1_t = jnp.transpose(w1).astype(matmul_dtype)   # (2S, H)
    w2_t = jnp.transpose(w2).astype(matmul_dtype)   # (H, A)
    b1_2d = jnp.reshape(b1, (1, -1)).astype(jnp.float32)
    b2_2d = jnp.reshape(b2, (1, -1)).astype(jnp.float32)
    return (w1_t, b1_2d, w2_t, b2_2d)


def _round_up(x, m):
    return ((x + m - 1) // m) * m


@functools.partial(jax.jit, static_argnames=("block_b", "out_dtype"))
def inverse_model_forward(s, sp, params, *, block_b=8192, out_dtype=None):
    """s, sp: (B, S) f32 or bf16.  params from prepare_inverse_model_params.

    Returns (B, A) in out_dtype (defaults to s.dtype)."""
    w1_t, b1_2d, w2_t, b2_2d = params
    B, S = s.shape
    two_s, H = w1_t.shape
    A = w2_t.shape[1]
    assert two_s == 2 * S
    if out_dtype is None:
        out_dtype = s.dtype

    # Row granularity 16 covers both f32 (8/sublane) and bf16 (16/sublane-pair)
    # packing; caller-supplied block_b is rounded up to stay legal.
    min_tile = 16
    block_b = max(min_tile, _round_up(int(block_b), min_tile))

    if B <= 2 * min_tile:
        # Tiny batch: one full-batch block (block == full dim is always legal).
        tb = B
    else:
        # Big batch tile (per-step overhead ~0.35-0.6 us swamps small tiles),
        # but keep >= 2 grid steps so v7x's two TensorCores both get work.
        tb = min(block_b, _round_up(pl.cdiv(B, 2), min_tile))
    grid = (pl.cdiv(B, tb),)

    nbytes = lambda a: int(a.size) * a.dtype.itemsize
    cost = pl.CostEstimate(
        flops=2 * B * (2 * S * H + H * A),
        transcendentals=0,
        bytes_accessed=sum(nbytes(a) for a in (s, sp, w1_t, b1_2d, w2_t, b2_2d))
        + B * A * jnp.dtype(out_dtype).itemsize,
    )

    return pl.pallas_call(
        _inverse_model_kernel,
        out_shape=jax.ShapeDtypeStruct((B, A), out_dtype),
        grid=grid,
        in_specs=[
            pl.BlockSpec((tb, S), lambda i: (i, 0)),       # s  (blocked over batch)
            pl.BlockSpec((tb, S), lambda i: (i, 0)),       # sp (blocked over batch)
            pl.BlockSpec((2 * S, H), lambda i: (0, 0)),    # w1 (resident)
            pl.BlockSpec((1, H), lambda i: (0, 0)),        # b1
            pl.BlockSpec((H, A), lambda i: (0, 0)),        # w2
            pl.BlockSpec((1, A), lambda i: (0, 0)),        # b2
        ],
        out_specs=pl.BlockSpec((tb, A), lambda i: (i, 0)),
        compiler_params=pltpu.CompilerParams(
            dimension_semantics=("parallel",)),
        cost_estimate=cost,
    )(s, sp, w1_t, b1_2d, w2_t, b2_2d)


def init_normc(key, out_dim, in_dim):
    """Deterministic equivalent of init_normc_: row-normalized normal weights."""
    w = jax.random.normal(key, (out_dim, in_dim), dtype=jnp.float32)
    w = w / jnp.sqrt(jnp.sum(w * w, axis=1, keepdims=True))
    return w


if __name__ == "__main__":
    # Small, forward-consistent shapes.
    batch = 8
    state_size = 32
    hidden_size = 32
    n_actions = 8

    key = jax.random.PRNGKey(0)
    k_s, k_sp, k_w1, k_w2, k_s2, k_sp2 = jax.random.split(key, 6)

    s = jax.random.normal(k_s, (batch, state_size), dtype=jnp.float32)
    sp = jax.random.normal(k_sp, (batch, state_size), dtype=jnp.float32)

    # Parameters (PyTorch Linear layout: weight (out, in), bias (out,); bias=0).
    w1 = init_normc(k_w1, hidden_size, 2 * state_size)
    b1 = jnp.zeros((hidden_size,), dtype=jnp.float32)
    w2 = init_normc(k_w2, n_actions, hidden_size)
    b2 = jnp.zeros((n_actions,), dtype=jnp.float32)

    # One-time layout prep (outside the per-call path).
    params = prepare_inverse_model_params(w1, b1, w2, b2)
    w1t_bf, b1_2d, w2t_bf, b2_2d = params

    def ref_bf16(sa, spa):
        """Reference with the kernel's numerics (bf16 matmul inputs, f32 acc)."""
        x_bf = jnp.concatenate([sa, spa], axis=1).astype(jnp.bfloat16)
        h = jnp.maximum(
            jnp.dot(x_bf, w1t_bf, preferred_element_type=jnp.float32) + b1_2d,
            0.0)
        return jnp.dot(h.astype(jnp.bfloat16), w2t_bf,
                       preferred_element_type=jnp.float32) + b2_2d

    # --- Case 1: small batch, f32 in / f32 out, single grid step. ---
    out = jax.block_until_ready(inverse_model_forward(s, sp, params))
    np.testing.assert_allclose(np.asarray(out), np.asarray(ref_bf16(s, sp)),
                               rtol=1e-4, atol=1e-4)

    # Full-f32 PyTorch-equivalent semantics (loose: bf16 matmuls in kernel).
    x = jnp.concatenate([s, sp], axis=1)
    ref_f32 = jnp.maximum(x @ w1.T + b1, 0.0) @ w2.T + b2
    np.testing.assert_allclose(np.asarray(out), np.asarray(ref_f32),
                               rtol=5e-2, atol=5e-2)

    # --- Case 2: larger non-multiple batch -> multi-step grid + partial last
    #     block, bf16 inputs (halved HBM reads) and bf16 output. ---
    big_b = 2000
    s_big = jax.random.normal(k_s2, (big_b, state_size), dtype=jnp.float32)
    sp_big = jax.random.normal(k_sp2, (big_b, state_size), dtype=jnp.float32)
    s_bf = s_big.astype(jnp.bfloat16)
    sp_bf = sp_big.astype(jnp.bfloat16)

    out_big = jax.block_until_ready(
        inverse_model_forward(s_bf, sp_bf, params, out_dtype=jnp.bfloat16))
    ref_big = ref_bf16(s_bf.astype(jnp.float32), sp_bf.astype(jnp.float32))
    np.testing.assert_allclose(np.asarray(out_big, dtype=np.float32),
                               np.asarray(ref_big), rtol=2e-2, atol=2e-2)

    print("KERNEL_OK")
</pallas_src>

<mosaic_0001>
module attributes {stable_mosaic.version = 11 : i64} {
  func.func @_inverse_model_kernel(%arg0: i32, %arg1: memref<8x32xf32, #tpu.memory_space<vmem>>, %arg2: memref<8x32xf32, #tpu.memory_space<vmem>>, %arg3: memref<64x32xbf16, #tpu.memory_space<vmem>>, %arg4: memref<1x32xf32, #tpu.memory_space<vmem>>, %arg5: memref<32x8xbf16, #tpu.memory_space<vmem>>, %arg6: memref<1x8xf32, #tpu.memory_space<vmem>>, %arg7: memref<8x8xf32, #tpu.memory_space<vmem>>) attributes {dimension_semantics = [#tpu.dimension_semantics<parallel>], iteration_bounds = array<i64: 1>, scalar_prefetch = 0 : i64, scratch_operands = 0 : i64, tpu.core_type = #tpu.core_type<tc>, window_params = [{transform_indices = @transform_0, window_bounds = array<i64: 8, 32>}, {transform_indices = @transform_1, window_bounds = array<i64: 8, 32>}, {pipeline_mode = #tpu.pipeline_mode<synchronous>, transform_indices = @transform_2, window_bounds = array<i64: 64, 32>}, {pipeline_mode = #tpu.pipeline_mode<synchronous>, transform_indices = @transform_3, window_bounds = array<i64: 1, 32>}, {pipeline_mode = #tpu.pipeline_mode<synchronous>, transform_indices = @transform_4, window_bounds = array<i64: 32, 8>}, {pipeline_mode = #tpu.pipeline_mode<synchronous>, transform_indices = @transform_5, window_bounds = array<i64: 1, 8>}, {transform_indices = @transform_6, window_bounds = array<i64: 8, 8>}]} {
    %c0 = arith.constant 0 : index
    %c0_0 = arith.constant 0 : index
    %0 = vector.load %arg1[%c0, %c0_0] : memref<8x32xf32, #tpu.memory_space<vmem>>, vector<8x32xf32>
    %1 = arith.truncf %0 : vector<8x32xf32> to vector<8x32xbf16>
    %c0_1 = arith.constant 0 : index
    %c0_2 = arith.constant 0 : index
    %2 = vector.load %arg2[%c0_1, %c0_2] : memref<8x32xf32, #tpu.memory_space<vmem>>, vector<8x32xf32>
    %3 = arith.truncf %2 : vector<8x32xf32> to vector<8x32xbf16>
    %c0_3 = arith.constant 0 : index
    %c0_4 = arith.constant 0 : index
    %4 = vector.load %arg3[%c0_3, %c0_4] : memref<64x32xbf16, #tpu.memory_space<vmem>>, vector<32x32xbf16>
    %cst = arith.constant dense<0.000000e+00> : vector<8x32xf32>
    %5 = tpu.matmul %1, %4, %cst {dimension_numbers = #tpu.dot_dimension_numbers<[1], [0], [0], [1], [0, 0, 1, 1], [], []>} : vector<8x32xbf16>, vector<32x32xbf16>, vector<8x32xf32> -> vector<8x32xf32>
    %c32 = arith.constant 32 : index
    %c0_5 = arith.constant 0 : index
    %6 = vector.load %arg3[%c32, %c0_5] : memref<64x32xbf16, #tpu.memory_space<vmem>>, vector<32x32xbf16>
    %cst_6 = arith.constant dense<0.000000e+00> : vector<8x32xf32>
    %7 = tpu.matmul %3, %6, %cst_6 {dimension_numbers = #tpu.dot_dimension_numbers<[1], [0], [0], [1], [0, 0, 1, 1], [], []>} : vector<8x32xbf16>, vector<32x32xbf16>, vector<8x32xf32> -> vector<8x32xf32>
    %8 = arith.addf %5, %7 : vector<8x32xf32>
    %c0_7 = arith.constant 0 : index
    %c0_8 = arith.constant 0 : index
    %9 = vector.load %arg4[%c0_7, %c0_8] : memref<1x32xf32, #tpu.memory_space<vmem>>, vector<1x32xf32>
    %10 = vector.broadcast %9 : vector<1x32xf32> to vector<8x32xf32>
    %11 = arith.addf %8, %10 : vector<8x32xf32>
    %cst_9 = arith.constant 0.000000e+00 : f32
    %12 = vector.broadcast %cst_9 : f32 to vector<8x32xf32>
    %13 = arith.maximumf %11, %12 : vector<8x32xf32>
    %14 = arith.truncf %13 : vector<8x32xf32> to vector<8x32xbf16>
    %c0_10 = arith.constant 0 : index
    %c0_11 = arith.constant 0 : index
    %15 = vector.load %arg5[%c0_10, %c0_11] : memref<32x8xbf16, #tpu.memory_space<vmem>>, vector<32x8xbf16>
    %cst_12 = arith.constant dense<0.000000e+00> : vector<8x8xf32>
    %16 = tpu.matmul %14, %15, %cst_12 {dimension_numbers = #tpu.dot_dimension_numbers<[1], [0], [0], [1], [0, 0, 1, 1], [], []>} : vector<8x32xbf16>, vector<32x8xbf16>, vector<8x8xf32> -> vector<8x8xf32>
    %c0_13 = arith.constant 0 : index
    %c0_14 = arith.constant 0 : index
    %17 = vector.load %arg6[%c0_13, %c0_14] : memref<1x8xf32, #tpu.memory_space<vmem>>, vector<1x8xf32>
    %18 = vector.broadcast %17 : vector<1x8xf32> to vector<8x8xf32>
    %19 = arith.addf %16, %18 : vector<8x8xf32>
    %c0_15 = arith.constant 0 : index
    %c0_16 = arith.constant 0 : index
    %20 = vector.load %arg7[%c0_15, %c0_16] : memref<8x8xf32, #tpu.memory_space<vmem>>, vector<8x8xf32>
    tpu.vector_store %arg7[%c0_15, %c0_16], %19 {strides = array<i32>} : memref<8x8xf32, #tpu.memory_space<vmem>>, vector<8x8xf32>,
    return
  }
  func.func @transform_0(%arg0: i32) -> (i32, i32) {
    %c0_i32 = arith.constant 0 : i32
    %c0_i32_0 = arith.constant 0 : i32
    return %arg0, %c0_i32 : i32, i32
  }
  func.func @transform_1(%arg0: i32) -> (i32, i32) {
    %c0_i32 = arith.constant 0 : i32
    %c0_i32_0 = arith.constant 0 : i32
    return %arg0, %c0_i32 : i32, i32
  }
  func.func @transform_2(%arg0: i32) -> (i32, i32) {
    %c0_i32 = arith.constant 0 : i32
    %c0_i32_0 = arith.constant 0 : i32
    %c0_i32_1 = arith.constant 0 : i32
    return %c0_i32, %c0_i32_0 : i32, i32
  }
  func.func @transform_3(%arg0: i32) -> (i32, i32) {
    %c0_i32 = arith.constant 0 : i32
    %c0_i32_0 = arith.constant 0 : i32
    %c0_i32_1 = arith.constant 0 : i32
    return %c0_i32, %c0_i32_0 : i32, i32
  }
  func.func @transform_4(%arg0: i32) -> (i32, i32) {
    %c0_i32 = arith.constant 0 : i32
    %c0_i32_0 = arith.constant 0 : i32
    %c0_i32_1 = arith.constant 0 : i32
    return %c0_i32, %c0_i32_0 : i32, i32
  }
  func.func @transform_5(%arg0: i32) -> (i32, i32) {
    %c0_i32 = arith.constant 0 : i32
    %c0_i32_0 = arith.constant 0 : i32
    %c0_i32_1 = arith.constant 0 : i32
    return %c0_i32, %c0_i32_0 : i32, i32
  }
  func.func @transform_6(%arg0: i32) -> (i32, i32) {
    %c0_i32 = arith.constant 0 : i32
    %c0_i32_0 = arith.constant 0 : i32
    return %arg0, %c0_i32 : i32, i32
  }
}

</mosaic_0001>

<llo_original>
// kernel: inverse_model_forward.1
$region0: #{inverse_model_forward.1}
  #allocation0 [shape = 'u32[]', space=smem, size = 0x4, offset = 0x4, fixed_abs, tag = 'smem constant byte address 0x4 - core index']
  #allocation1 [shape = 'u32[144,128]{1,0:T(1,128)}', space=vmem, size = 0x12000, scoped, tag = 'internal scratch']
  %s0 = inlined_call_operand.vmem [shape: f32[8,32], index: 0, kind: input, shape index: {}]
  %s1 = inlined_call_operand.vmem [shape: f32[8,32], index: 1, kind: input, shape index: {}]
  %s2 = inlined_call_operand.vmem [shape: bf16[64,32], index: 2, kind: input, shape index: {}]
  %s3 = inlined_call_operand.vmem [shape: f32[1,32], index: 3, kind: input, shape index: {}]
  %s4 = inlined_call_operand.vmem [shape: bf16[32,8], index: 4, kind: input, shape index: {}]
  %s5 = inlined_call_operand.vmem [shape: f32[1,8], index: 5, kind: input, shape index: {}]
  %s6 = inlined_call_operand.hbm [shape: f32[8,8], index: 6, kind: output, shape index: {}]
  %s7 = sld [smem:[#allocation0]]
  $region34: #{inverse_model_forward.1} parent=0
    _
  %s9 = ssub.s32 1, %s7
  %s10 = scalar_select 0, %s9, %s7
  $region1: #{inverse_model_forward.1} parent=0
    #allocation2 [shape = 'u8[4096]{0}', space=vmem, size = 0x1000, scoped, tag = 'output window, operand 0, single buffered']
    #allocation3 [shape = 's32[1]{0}', space=sflag, size = 0x4, scoped, tag = 'scoped memory for inverse_model_forward.1']
    %11 = vsyncpa [#allocation3], 0
    // Predicated region
    $region2: #{inverse_model_forward.1} parent=1 // pred_check
      _
    $region3: #{inverse_model_forward.1} parent=1 // pred_check_branch
      %13 = sbr.rel (0) target = $region5
    $region4: #{inverse_model_forward.1} parent=1 // pred_region
      _
    $region5: #{inverse_model_forward.1} parent=1 // pred_fallthru
      _
    // Predicated region
    $region6: #{inverse_model_forward.1} parent=1 // pred_check
      _
    $region7: #{inverse_model_forward.1} parent=1 // pred_check_branch
      %15 = sbr.rel (0) target = $region9
    $region8: #{inverse_model_forward.1} parent=1 // pred_region
      _
    $region9: #{inverse_model_forward.1} parent=1 // pred_fallthru
      _
    // Predicated region
    $region10: #{inverse_model_forward.1} parent=1 // pred_check
      _
    $region11: #{inverse_model_forward.1} parent=1 // pred_check_branch
      %17 = sbr.rel (0) target = $region13
    $region12: #{inverse_model_forward.1} parent=1 // pred_region
      _
    $region13: #{inverse_model_forward.1} parent=1 // pred_fallthru
      _
    // Predicated region
    $region14: #{inverse_model_forward.1} parent=1 // pred_check
      _
    $region15: #{inverse_model_forward.1} parent=1 // pred_check_branch
      %19 = sbr.rel (0) target = $region17
    $region16: #{inverse_model_forward.1} parent=1 // pred_region
      _
    $region17: #{inverse_model_forward.1} parent=1 // pred_fallthru
      _
    // Predicated region
    $region18: #{inverse_model_forward.1} parent=1 // pred_check
      _
    $region19: #{inverse_model_forward.1} parent=1 // pred_check_branch
      %21 = sbr.rel (0) target = $region21
    $region20: #{inverse_model_forward.1} parent=1 // pred_region
      _
    $region21: #{inverse_model_forward.1} parent=1 // pred_fallthru
      _
    // Predicated region
    $region22: #{inverse_model_forward.1} parent=1 // pred_check
      _
    $region23: #{inverse_model_forward.1} parent=1 // pred_check_branch
      %23 = sbr.rel (0) target = $region25
    $region24: #{inverse_model_forward.1} parent=1 // pred_region
      _
    $region25: #{inverse_model_forward.1} parent=1 // pred_fallthru
      _
    %v25 = vld [vmem:[%s0] sm:$0xff]
    %v26 = vpack.c.bf16 %v25, %v25
    %v27 = vld [vmem:[%s1] sm:$0xff]
    %v28 = vpack.c.bf16 %v27, %v27
    %v29 = vld [vmem:[%s2] sm:$0xf]
    %v30 = vld [vmem:[%s2 + $0x4] sm:$0xf]
    %v31 = vld [vmem:[%s2 + $0x8] sm:$0xf]
    %v32 = vld [vmem:[%s2 + $0xc] sm:$0xf]
    %v33 = vld [vmem:[%s2 + $0x10] sm:$0xf]
    %v34 = vld [vmem:[%s2 + $0x14] sm:$0xf]
    %v35 = vld [vmem:[%s2 + $0x18] sm:$0xf]
    %v36 = vld [vmem:[%s2 + $0x1c] sm:$0xf]
    %v41 = vunpack.c.l.b16 %v33
    %v42 = vunpack.c.l.b16 %v34
    %v43 = vunpack.c.l.b16 %v35
    %v44 = vunpack.c.l.b16 %v36
    %v45 = vpack.c.b16 %v42, %v41
    %v46 = vpack.c.b16 %v44, %v43
    %vm49 = vcmask 261120
    %v51 = vsel %vm49, %v28, 0
    %53 = vmatprep.subr.bf16.mxu0 0
    %54 = vmatpush1.bf16.msra.mxu0 %v45
    %55 = vmatprep.subr.bf16.mxu0 0
    %56 = vmatpush1.bf16.msra.mxu0 %v46
    %57 = vmatprep.subr.bf16.mxu0 0
    %58 = vmatpush1.bf16.msra.mxu0 0
    %59 = vmatprep.subr.bf16.mxu0 0
    %60 = vmatpush1.bf16.msra.mxu0 0
    %61 = vmatprep.subr.bf16.mxu0 0
    %62 = vmatpush1.bf16.msra.mxu0 0
    %63 = vmatprep.subr.bf16.mxu0 0
    %64 = vmatpush1.bf16.msra.mxu0 0
    %65 = vmatprep.subr.bf16.mxu0 0
    %66 = vmatpush1.bf16.msra.mxu0 0
    %67 = vmatprep.subr.bf16.mxu0 0
    %68 = vmatpush1.bf16.msra.mxu0 0
    %69 = vmatprep.subr.bf16.mxu0 0
    %70 = vmatpush1.bf16.msra.mxu0 0
    %71 = vmatprep.subr.bf16.mxu0 0
    %72 = vmatpush1.bf16.msra.mxu0 0
    %73 = vmatprep.subr.bf16.mxu0 0
    %74 = vmatpush1.bf16.msra.mxu0 0
    %75 = vmatprep.subr.bf16.mxu0 0
    %76 = vmatpush1.bf16.msra.mxu0 0
    %77 = vmatprep.subr.bf16.mxu0 0
    %78 = vmatpush1.bf16.msra.mxu0 0
    %79 = vmatprep.subr.bf16.mxu0 0
    %80 = vmatpush1.bf16.msra.mxu0 0
    %81 = vmatprep.subr.bf16.mxu0 0
    %82 = vmatpush1.bf16.msra.mxu0 0
    %83 = vmatprep.subr.bf16.mxu0 0
    %84 = vmatpush1.bf16.msra.mxu0 0
    %85 = vmatprep.mubr.bf16.mxu0 0
    %86 = vmatmul.mubr.bf16.gmra.mrb[0].mxu0 %v51
    %v87 = vpop.f32.mrb[0].mxu0
    %v88 = vadd.f32 0.0, %v87
    %v89 = vpop.f32.mrb[0].mxu0
    %v90 = vpop.f32.mrb[0].mxu0
    %v91 = vpop.f32.mrb[0].mxu0
    %92 = vdwg.mxu0
    %v97 = vunpack.c.l.b16 %v29
    %v98 = vunpack.c.l.b16 %v30
    %v99 = vunpack.c.l.b16 %v31
    %v100 = vunpack.c.l.b16 %v32
    %v101 = vpack.c.b16 %v98, %v97
    %v102 = vpack.c.b16 %v100, %v99
    %v106 = vsel %vm49, %v26, 0
    %108 = vmatprep.subr.bf16.mxu0 0
    %109 = vmatpush1.bf16.msra.mxu0 %v101
    %110 = vmatprep.subr.bf16.mxu0 0
    %111 = vmatpush1.bf16.msra.mxu0 %v102
    %112 = vmatprep.subr.bf16.mxu0 0
    %113 = vmatpush1.bf16.msra.mxu0 0
    %114 = vmatprep.subr.bf16.mxu0 0
    %115 = vmatpush1.bf16.msra.mxu0 0
    %116 = vmatprep.subr.bf16.mxu0 0
    %117 = vmatpush1.bf16.msra.mxu0 0
    %118 = vmatprep.subr.bf16.mxu0 0
    %119 = vmatpush1.bf16.msra.mxu0 0
    %120 = vmatprep.subr.bf16.mxu0 0
    %121 = vmatpush1.bf16.msra.mxu0 0
    %122 = vmatprep.subr.bf16.mxu0 0
    %123 = vmatpush1.bf16.msra.mxu0 0
    %124 = vmatprep.subr.bf16.mxu0 0
    %125 = vmatpush1.bf16.msra.mxu0 0
    %126 = vmatprep.subr.bf16.mxu0 0
    %127 = vmatpush1.bf16.msra.mxu0 0
    %128 = vmatprep.subr.bf16.mxu0 0
    %129 = vmatpush1.bf16.msra.mxu0 0
    %130 = vmatprep.subr.bf16.mxu0 0
    %131 = vmatpush1.bf16.msra.mxu0 0
    %132 = vmatprep.subr.bf16.mxu0 0
    %133 = vmatpush1.bf16.msra.mxu0 0
    %134 = vmatprep.subr.bf16.mxu0 0
    %135 = vmatpush1.bf16.msra.mxu0 0
    %136 = vmatprep.subr.bf16.mxu0 0
    %137 = vmatpush1.bf16.msra.mxu0 0
    %138 = vmatprep.subr.bf16.mxu0 0
    %139 = vmatpush1.bf16.msra.mxu0 0
    %140 = vmatprep.mubr.bf16.mxu0 0
    %141 = vmatmul.mubr.bf16.gmra.mrb[0].mxu0 %v106
    %v142 = vpop.f32.mrb[0].mxu0
    %v143 = vadd.f32 %v88, %v142
    %v144 = vpop.f32.mrb[0].mxu0
    %v145 = vpop.f32.mrb[0].mxu0
    %v146 = vpop.f32.mrb[0].mxu0
    %147 = vdwg.mxu0
    %v148 = vld [vmem:[%s3] sm:$0x1]
    %v150 = vlaneseq
    %v151 = vshrl.u32 %v150, 7
    %v152 = vsub.s32 0, %v151
    %v153 = vrot.slane %v148, %v152
    %v155 = vadd.f32 %v143, %v153
    %v156 = vmax.f32 %v155, 0.0
    %v157 = vpack.c.bf16 %v156, %v156
    %v158 = vld [vmem:[%s4] sm:$0xf]
    %v159 = vld [vmem:[%s4 + $0x4] sm:$0xf]
    %v160 = vld [vmem:[%s4 + $0x8] sm:$0xf]
    %v161 = vld [vmem:[%s4 + $0xc] sm:$0xf]
    %v162 = vld [vmem:[%s5] sm:$0x1]
    %v164 = vlaneseq
    %v165 = vshrl.u32 %v164, 7
    %v166 = vsub.s32 0, %v165
    %v167 = vrot.slane %v162, %v166
    %v173 = vunpack.c.l.b16 %v158
    %v174 = vunpack.c.l.b16 %v159
    %v175 = vunpack.c.l.b16 %v160
    %v176 = vunpack.c.l.b16 %v161
    %v177 = vpack.c.b16 %v174, %v173
    %v178 = vpack.c.b16 %v176, %v175
    %v182 = vsel %vm49, %v157, 0
    %184 = vmatprep.subr.bf16.mxu0 0
    %185 = vmatpush1.bf16.msra.mxu0 %v177
    %186 = vmatprep.subr.bf16.mxu0 0
    %187 = vmatpush1.bf16.msra.mxu0 %v178
    %188 = vmatprep.subr.bf16.mxu0 0
    %189 = vmatpush1.bf16.msra.mxu0 0
    %190 = vmatprep.subr.bf16.mxu0 0
    %191 = vmatpush1.bf16.msra.mxu0 0
    %192 = vmatprep.subr.bf16.mxu0 0
    %193 = vmatpush1.bf16.msra.mxu0 0
    %194 = vmatprep.subr.bf16.mxu0 0
    %195 = vmatpush1.bf16.msra.mxu0 0
    %196 = vmatprep.subr.bf16.mxu0 0
    %197 = vmatpush1.bf16.msra.mxu0 0
    %198 = vmatprep.subr.bf16.mxu0 0
    %199 = vmatpush1.bf16.msra.mxu0 0
    %200 = vmatprep.subr.bf16.mxu0 0
    %201 = vmatpush1.bf16.msra.mxu0 0
    %202 = vmatprep.subr.bf16.mxu0 0
    %203 = vmatpush1.bf16.msra.mxu0 0
    %204 = vmatprep.subr.bf16.mxu0 0
    %205 = vmatpush1.bf16.msra.mxu0 0
    %206 = vmatprep.subr.bf16.mxu0 0
    %207 = vmatpush1.bf16.msra.mxu0 0
    %208 = vmatprep.subr.bf16.mxu0 0
    %209 = vmatpush1.bf16.msra.mxu0 0
    %210 = vmatprep.subr.bf16.mxu0 0
    %211 = vmatpush1.bf16.msra.mxu0 0
    %212 = vmatprep.subr.bf16.mxu0 0
    %213 = vmatpush1.bf16.msra.mxu0 0
    %214 = vmatprep.subr.bf16.mxu0 0
    %215 = vmatpush1.bf16.msra.mxu0 0
    %216 = vmatprep.mubr.bf16.mxu0 0
    %217 = vmatmul.mubr.bf16.gmra.mrb[0].mxu0 %v182
    %v218 = vpop.f32.mrb[0].mxu0
    %v219 = vadd.f32 %v167, %v218
    %v220 = vpop.f32.mrb[0].mxu0
    %v221 = vpop.f32.mrb[0].mxu0
    %v222 = vpop.f32.mrb[0].mxu0
    %223 = vdwg.mxu0
    %vm224 = vcmask 64512
    %225 = vst.msk [vmem:[#allocation2] sm:$0xff] %vm224, %v219
    // Predicated region
    $region26: #{inverse_model_forward.1} parent=1 // pred_check
      _
    $region27: #{inverse_model_forward.1} parent=1 // pred_check_branch
      %227 = sbr.rel (0) target = $region29
    $region28: #{inverse_model_forward.1} parent=1 // pred_region
      %s229 = ssub.s32 128, 128
      %230 = vsyncadd [#allocation3], %s229
      %s232 = sshll.u32 [#allocation2], 4
      %s233 = int_to_ptr.vmem [resolvable:$true] %s232
      %235 = dma.vmem_to_hbm [thread:$0]  %s233, 128, %s6, [#allocation3]
    $region29: #{inverse_model_forward.1} parent=1 // pred_fallthru
      _
    // Predicated region
    $region30: #{inverse_model_forward.1} parent=1 // pred_check
      _
    $region31: #{inverse_model_forward.1} parent=1 // pred_check_branch
      %237 = sbr.rel (0) target = $region33
    $region32: #{inverse_model_forward.1} parent=1 // pred_region
      %238 = dma.done [#allocation3], 128
    $region33: #{inverse_model_forward.1} parent=1 // pred_fallthru
      _
    %239 = vsyncpa [#allocation3], 1

</llo_original>
